<compile_context>
chip_gen: v7x
topology: tpu7x:2x2x1
jax: 0.10.0
libtpu: 0.0.40
codegen_flags: <defaults>
</compile_context>

<pallas_src>
import jax
import jax.numpy as jnp
from jax.experimental import pallas as pl
from jax.experimental.pallas import tpu as pltpu

ALPHA = 0.2
SMOOTH = 1e-05


def _round_up(x, m):
    return (x + m - 1) // m * m


def _myloss_sums_kernel(pred_ref, gt_ref, out_ref,
                        acc_pg, acc_p, acc_g, acc_b):
    # pred_ref/gt_ref block: (1, rows_block, L)   out_ref block: (1, 4, 128)
    r = pl.program_id(1)

    @pl.when(r == 0)
    def _():
        acc_pg[...] = jnp.zeros_like(acc_pg)
        acc_p[...] = jnp.zeros_like(acc_p)
        acc_g[...] = jnp.zeros_like(acc_g)
        acc_b[...] = jnp.zeros_like(acc_b)

    p = pred_ref[0].astype(jnp.float32)   # (rows_block, L)
    g = gt_ref[0].astype(jnp.float32)     # (rows_block, L)

    # BCE with PyTorch BCELoss' log clamp at -100 (clamp BEFORE the multiply
    # so p==0 / p==1 padding or saturation never produces NaN).
    log_p = jnp.maximum(jnp.log(p), -100.0)
    log_1mp = jnp.maximum(jnp.log(1.0 - p), -100.0)
    bce = -(g * log_p + (1.0 - g) * log_1mp)

    # Pure elementwise accumulation in the steady state (VPU/EUP only).
    acc_pg[...] += p * g
    acc_p[...] += p
    acc_g[...] += g
    acc_b[...] += bce

    # Cross-lane reduce + single lane-dense store, once per sample.
    @pl.when(r == pl.num_programs(1) - 1)
    def _():
        inter = jnp.sum(acc_pg[...])
        psum = jnp.sum(acc_p[...])
        gsum = jnp.sum(acc_g[...])
        bsum = jnp.sum(acc_b[...])
        out_ref[0] = jnp.concatenate(
            [jnp.full((1, 128), inter, jnp.float32),
             jnp.full((1, 128), psum, jnp.float32),
             jnp.full((1, 128), gsum, jnp.float32),
             jnp.full((1, 128), bsum, jnp.float32)],
            axis=0)


def myloss_pallas(pred, gt, alpha=ALPHA, smooth=SMOOTH):
    """pred, gt: (N, C, H, W); pred in (0, 1), gt in [0, 1]."""
    N = pred.shape[0]
    D = 1
    for s in pred.shape[1:]:
        D *= s

    # --- tiling: (rows_block, L) blocks, (8,128)-aligned, ~1 MB per input ---
    L = 512 if D >= 8 * 512 else 128
    R = -(-D // L)                                     # rows per sample
    max_rows = max(8, ((1 << 20) // (4 * L)) // 8 * 8)  # ~1 MiB f32 block cap
    rows_block = min(_round_up(R, 8), max_rows)
    num_chunks = -(-R // rows_block)
    R_pad = num_chunks * rows_block
    D_pad = R_pad * L

    # Stream inputs in their native dtype; cast happens in-kernel.
    pred2 = pred.reshape(N, D)
    gt2 = gt.reshape(N, D)
    if D_pad != D:
        # Zero padding is exact for all four accumulated sums (see header).
        pred2 = jnp.pad(pred2, ((0, 0), (0, D_pad - D)))
        gt2 = jnp.pad(gt2, ((0, 0), (0, D_pad - D)))
    pred3 = pred2.reshape(N, R_pad, L)
    gt3 = gt2.reshape(N, R_pad, L)

    stats = pl.pallas_call(
        _myloss_sums_kernel,
        out_shape=jax.ShapeDtypeStruct((N, 4, 128), jnp.float32),
        grid=(N, num_chunks),
        in_specs=[
            pl.BlockSpec((1, rows_block, L), lambda n, r: (n, r, 0)),
            pl.BlockSpec((1, rows_block, L), lambda n, r: (n, r, 0)),
        ],
        out_specs=pl.BlockSpec((1, 4, 128), lambda n, r: (n, 0, 0)),
        scratch_shapes=[pltpu.VMEM((rows_block, L), jnp.float32)] * 4,
        compiler_params=pltpu.CompilerParams(
            dimension_semantics=("parallel", "arbitrary")),
    )(pred3, gt3)

    inter = stats[:, 0, 0]
    psum = stats[:, 1, 0]
    gsum = stats[:, 2, 0]
    bce_mean = stats[:, 3, 0] / float(D)

    dice = (2.0 * inter + smooth) / (psum + gsum + smooth)
    loss = (1.0 - dice) + alpha * bce_mean
    return jnp.mean(loss)


def myloss_ref(pred, gt, alpha=ALPHA, smooth=SMOOTH):
    N = pred.shape[0]
    p = pred.reshape(N, -1).astype(jnp.float32)
    g = gt.reshape(N, -1).astype(jnp.float32)
    bce = -(g * jnp.maximum(jnp.log(p), -100.0)
            + (1.0 - g) * jnp.maximum(jnp.log(1.0 - p), -100.0))
    inter = jnp.sum(p * g, axis=1)
    union = jnp.sum(p, axis=1) + jnp.sum(g, axis=1)
    dice = (2.0 * inter + smooth) / (union + smooth)
    loss = (1.0 - dice) + alpha * jnp.mean(bce, axis=1)
    return jnp.mean(loss)


if __name__ == "__main__":
    key = jax.random.PRNGKey(0)
    k1, k2 = jax.random.split(key)
    N, C, H, W = 2, 4, 16, 16
    # pred in (0, 1) (as if after a sigmoid); gt is a binary mask.
    pred = jax.nn.sigmoid(jax.random.normal(k1, (N, C, H, W), jnp.float32))
    gt = (jax.random.uniform(k2, (N, C, H, W), jnp.float32) > 0.5).astype(
        jnp.float32)

    out = myloss_pallas(pred, gt)
    out = jax.block_until_ready(out)

    ref = myloss_ref(pred, gt)
    assert jnp.allclose(out, ref, rtol=1e-5, atol=1e-5), (out, ref)
    print("KERNEL_OK")
</pallas_src>

<mosaic_0001>
module attributes {stable_mosaic.version = 11 : i64} {
  func.func @_myloss_sums_kernel(%arg0: i32, %arg1: i32, %arg2: memref<1x8x128xf32, #tpu.memory_space<vmem>>, %arg3: memref<1x8x128xf32, #tpu.memory_space<vmem>>, %arg4: memref<1x4x128xf32, #tpu.memory_space<vmem>>, %arg5: memref<8x128xf32, #tpu.memory_space<vmem>>, %arg6: memref<8x128xf32, #tpu.memory_space<vmem>>, %arg7: memref<8x128xf32, #tpu.memory_space<vmem>>, %arg8: memref<8x128xf32, #tpu.memory_space<vmem>>) attributes {dimension_semantics = [#tpu.dimension_semantics<parallel>, #tpu.dimension_semantics<arbitrary>], iteration_bounds = array<i64: 2, 1>, scalar_prefetch = 0 : i64, scratch_operands = 4 : i64, tpu.core_type = #tpu.core_type<tc>, window_params = [{transform_indices = @transform_0, window_bounds = array<i64: 1, 8, 128>}, {transform_indices = @transform_1, window_bounds = array<i64: 1, 8, 128>}, {transform_indices = @transform_2, window_bounds = array<i64: 1, 4, 128>}]} {
    %c0_i32 = arith.constant 0 : i32
    %0 = arith.cmpi eq, %arg1, %c0_i32 : i32
    %1 = arith.extui %0 : i1 to i32
    %c0_i32_0 = arith.constant 0 : i32
    %2 = arith.cmpi ne, %1, %c0_i32_0 : i32
    scf.if %2 {
      %cst_28 = arith.constant 0.000000e+00 : f32
      %38 = vector.broadcast %cst_28 : f32 to vector<8x128xf32>
      %c0_29 = arith.constant 0 : index
      %c0_30 = arith.constant 0 : index
      %39 = vector.load %arg5[%c0_29, %c0_30] : memref<8x128xf32, #tpu.memory_space<vmem>>, vector<8x128xf32>
      tpu.vector_store %arg5[%c0_29, %c0_30], %38 {strides = array<i32>} : memref<8x128xf32, #tpu.memory_space<vmem>>, vector<8x128xf32>,
      %cst_31 = arith.constant 0.000000e+00 : f32
      %40 = vector.broadcast %cst_31 : f32 to vector<8x128xf32>
      %c0_32 = arith.constant 0 : index
      %c0_33 = arith.constant 0 : index
      %41 = vector.load %arg6[%c0_32, %c0_33] : memref<8x128xf32, #tpu.memory_space<vmem>>, vector<8x128xf32>
      tpu.vector_store %arg6[%c0_32, %c0_33], %40 {strides = array<i32>} : memref<8x128xf32, #tpu.memory_space<vmem>>, vector<8x128xf32>,
      %cst_34 = arith.constant 0.000000e+00 : f32
      %42 = vector.broadcast %cst_34 : f32 to vector<8x128xf32>
      %c0_35 = arith.constant 0 : index
      %c0_36 = arith.constant 0 : index
      %43 = vector.load %arg7[%c0_35, %c0_36] : memref<8x128xf32, #tpu.memory_space<vmem>>, vector<8x128xf32>
      tpu.vector_store %arg7[%c0_35, %c0_36], %42 {strides = array<i32>} : memref<8x128xf32, #tpu.memory_space<vmem>>, vector<8x128xf32>,
      %cst_37 = arith.constant 0.000000e+00 : f32
      %44 = vector.broadcast %cst_37 : f32 to vector<8x128xf32>
      %c0_38 = arith.constant 0 : index
      %c0_39 = arith.constant 0 : index
      %45 = vector.load %arg8[%c0_38, %c0_39] : memref<8x128xf32, #tpu.memory_space<vmem>>, vector<8x128xf32>
      tpu.vector_store %arg8[%c0_38, %c0_39], %44 {strides = array<i32>} : memref<8x128xf32, #tpu.memory_space<vmem>>, vector<8x128xf32>,
    } else {
    }
    %c0 = arith.constant 0 : index
    %c0_1 = arith.constant 0 : index
    %c0_2 = arith.constant 0 : index
    %3 = vector.load %arg2[%c0, %c0_1, %c0_2] : memref<1x8x128xf32, #tpu.memory_space<vmem>>, vector<1x8x128xf32>
    %4 = vector.shape_cast %3 : vector<1x8x128xf32> to vector<8x128xf32>
    %c0_3 = arith.constant 0 : index
    %c0_4 = arith.constant 0 : index
    %c0_5 = arith.constant 0 : index
    %5 = vector.load %arg3[%c0_3, %c0_4, %c0_5] : memref<1x8x128xf32, #tpu.memory_space<vmem>>, vector<1x8x128xf32>
    %6 = vector.shape_cast %5 : vector<1x8x128xf32> to vector<8x128xf32>
    %7 = math.log %4 : vector<8x128xf32>
    %cst = arith.constant -1.000000e+02 : f32
    %8 = vector.broadcast %cst : f32 to vector<8x128xf32>
    %9 = arith.maximumf %7, %8 : vector<8x128xf32>
    %cst_6 = arith.constant 1.000000e+00 : f32
    %10 = vector.broadcast %cst_6 : f32 to vector<8x128xf32>
    %11 = arith.subf %10, %4 : vector<8x128xf32>
    %12 = math.log %11 : vector<8x128xf32>
    %cst_7 = arith.constant -1.000000e+02 : f32
    %13 = vector.broadcast %cst_7 : f32 to vector<8x128xf32>
    %14 = arith.maximumf %12, %13 : vector<8x128xf32>
    %15 = arith.mulf %6, %9 : vector<8x128xf32>
    %cst_8 = arith.constant 1.000000e+00 : f32
    %16 = vector.broadcast %cst_8 : f32 to vector<8x128xf32>
    %17 = arith.subf %16, %6 : vector<8x128xf32>
    %18 = arith.mulf %17, %14 : vector<8x128xf32>
    %19 = arith.addf %15, %18 : vector<8x128xf32>
    %cst_9 = arith.constant 0.000000e+00 : f32
    %20 = vector.broadcast %cst_9 : f32 to vector<8x128xf32>
    %21 = arith.subf %20, %19 : vector<8x128xf32>
    %c0_10 = arith.constant 0 : index
    %c0_11 = arith.constant 0 : index
    %22 = vector.load %arg5[%c0_10, %c0_11] : memref<8x128xf32, #tpu.memory_space<vmem>>, vector<8x128xf32>
    %23 = arith.mulf %4, %6 : vector<8x128xf32>
    %24 = arith.addf %22, %23 : vector<8x128xf32>
    %c0_12 = arith.constant 0 : index
    %c0_13 = arith.constant 0 : index
    %25 = vector.load %arg5[%c0_12, %c0_13] : memref<8x128xf32, #tpu.memory_space<vmem>>, vector<8x128xf32>
    tpu.vector_store %arg5[%c0_12, %c0_13], %24 {strides = array<i32>} : memref<8x128xf32, #tpu.memory_space<vmem>>, vector<8x128xf32>,
    %c0_14 = arith.constant 0 : index
    %c0_15 = arith.constant 0 : index
    %26 = vector.load %arg6[%c0_14, %c0_15] : memref<8x128xf32, #tpu.memory_space<vmem>>, vector<8x128xf32>
    %27 = arith.addf %26, %4 : vector<8x128xf32>
    %c0_16 = arith.constant 0 : index
    %c0_17 = arith.constant 0 : index
    %28 = vector.load %arg6[%c0_16, %c0_17] : memref<8x128xf32, #tpu.memory_space<vmem>>, vector<8x128xf32>
    tpu.vector_store %arg6[%c0_16, %c0_17], %27 {strides = array<i32>} : memref<8x128xf32, #tpu.memory_space<vmem>>, vector<8x128xf32>,
    %c0_18 = arith.constant 0 : index
    %c0_19 = arith.constant 0 : index
    %29 = vector.load %arg7[%c0_18, %c0_19] : memref<8x128xf32, #tpu.memory_space<vmem>>, vector<8x128xf32>
    %30 = arith.addf %29, %6 : vector<8x128xf32>
    %c0_20 = arith.constant 0 : index
    %c0_21 = arith.constant 0 : index
    %31 = vector.load %arg7[%c0_20, %c0_21] : memref<8x128xf32, #tpu.memory_space<vmem>>, vector<8x128xf32>
    tpu.vector_store %arg7[%c0_20, %c0_21], %30 {strides = array<i32>} : memref<8x128xf32, #tpu.memory_space<vmem>>, vector<8x128xf32>,
    %c0_22 = arith.constant 0 : index
    %c0_23 = arith.constant 0 : index
    %32 = vector.load %arg8[%c0_22, %c0_23] : memref<8x128xf32, #tpu.memory_space<vmem>>, vector<8x128xf32>
    %33 = arith.addf %32, %21 : vector<8x128xf32>
    %c0_24 = arith.constant 0 : index
    %c0_25 = arith.constant 0 : index
    %34 = vector.load %arg8[%c0_24, %c0_25] : memref<8x128xf32, #tpu.memory_space<vmem>>, vector<8x128xf32>
    tpu.vector_store %arg8[%c0_24, %c0_25], %33 {strides = array<i32>} : memref<8x128xf32, #tpu.memory_space<vmem>>, vector<8x128xf32>,
    %c0_i32_26 = arith.constant 0 : i32
    %35 = arith.cmpi eq, %arg1, %c0_i32_26 : i32
    %36 = arith.extui %35 : i1 to i32
    %c0_i32_27 = arith.constant 0 : i32
    %37 = arith.cmpi ne, %36, %c0_i32_27 : i32
    scf.if %37 {
      %c0_28 = arith.constant 0 : index
      %c0_29 = arith.constant 0 : index
      %38 = vector.load %arg5[%c0_28, %c0_29] : memref<8x128xf32, #tpu.memory_space<vmem>>, vector<8x128xf32>
      %39 = vector.shape_cast %38 : vector<8x128xf32> to vector<1x8x128xf32>
      %cst_30 = arith.constant dense<0.000000e+00> : vector<1xf32>
      %40 = vector.multi_reduction <add>, %39, %cst_30 [1, 2] : vector<1x8x128xf32> to vector<1xf32>
      %41 = vector.shape_cast %40 : vector<1xf32> to vector<1x1x1xf32>
      %42 = vector.extract %41[0, 0, 0] : f32 from vector<1x1x1xf32>
      %c0_31 = arith.constant 0 : index
      %c0_32 = arith.constant 0 : index
      %43 = vector.load %arg6[%c0_31, %c0_32] : memref<8x128xf32, #tpu.memory_space<vmem>>, vector<8x128xf32>
      %44 = vector.shape_cast %43 : vector<8x128xf32> to vector<1x8x128xf32>
      %cst_33 = arith.constant dense<0.000000e+00> : vector<1xf32>
      %45 = vector.multi_reduction <add>, %44, %cst_33 [1, 2] : vector<1x8x128xf32> to vector<1xf32>
      %46 = vector.shape_cast %45 : vector<1xf32> to vector<1x1x1xf32>
      %47 = vector.extract %46[0, 0, 0] : f32 from vector<1x1x1xf32>
      %c0_34 = arith.constant 0 : index
      %c0_35 = arith.constant 0 : index
      %48 = vector.load %arg7[%c0_34, %c0_35] : memref<8x128xf32, #tpu.memory_space<vmem>>, vector<8x128xf32>
      %49 = vector.shape_cast %48 : vector<8x128xf32> to vector<1x8x128xf32>
      %cst_36 = arith.constant dense<0.000000e+00> : vector<1xf32>
      %50 = vector.multi_reduction <add>, %49, %cst_36 [1, 2] : vector<1x8x128xf32> to vector<1xf32>
      %51 = vector.shape_cast %50 : vector<1xf32> to vector<1x1x1xf32>
      %52 = vector.extract %51[0, 0, 0] : f32 from vector<1x1x1xf32>
      %c0_37 = arith.constant 0 : index
      %c0_38 = arith.constant 0 : index
      %53 = vector.load %arg8[%c0_37, %c0_38] : memref<8x128xf32, #tpu.memory_space<vmem>>, vector<8x128xf32>
      %54 = vector.shape_cast %53 : vector<8x128xf32> to vector<1x8x128xf32>
      %cst_39 = arith.constant dense<0.000000e+00> : vector<1xf32>
      %55 = vector.multi_reduction <add>, %54, %cst_39 [1, 2] : vector<1x8x128xf32> to vector<1xf32>
      %56 = vector.shape_cast %55 : vector<1xf32> to vector<1x1x1xf32>
      %57 = vector.extract %56[0, 0, 0] : f32 from vector<1x1x1xf32>
      %58 = vector.broadcast %42 : f32 to vector<1x128xf32>
      %59 = vector.broadcast %47 : f32 to vector<1x128xf32>
      %60 = vector.broadcast %52 : f32 to vector<1x128xf32>
      %61 = vector.broadcast %57 : f32 to vector<1x128xf32>
      %62 = tpu.concatenate %58, %59, %60, %61 in 0 : vector<1x128xf32>, vector<1x128xf32>, vector<1x128xf32>, vector<1x128xf32> -> vector<4x128xf32>
      %c0_40 = arith.constant 0 : index
      %c0_41 = arith.constant 0 : index
      %c0_42 = arith.constant 0 : index
      %63 = vector.load %arg4[%c0_40, %c0_41, %c0_42] : memref<1x4x128xf32, #tpu.memory_space<vmem>>, vector<1x4x128xf32>
      %64 = vector.shape_cast %63 : vector<1x4x128xf32> to vector<4x128xf32>
      %65 = vector.shape_cast %62 : vector<4x128xf32> to vector<1x4x128xf32>
      tpu.vector_store %arg4[%c0_40, %c0_41, %c0_42], %65 {strides = array<i32>} : memref<1x4x128xf32, #tpu.memory_space<vmem>>, vector<1x4x128xf32>,
    } else {
    }
    return
  }
  func.func @transform_0(%arg0: i32, %arg1: i32) -> (i32, i32, i32) {
    %c0_i32 = arith.constant 0 : i32
    %c0_i32_0 = arith.constant 0 : i32
    return %arg0, %arg1, %c0_i32 : i32, i32, i32
  }
  func.func @transform_1(%arg0: i32, %arg1: i32) -> (i32, i32, i32) {
    %c0_i32 = arith.constant 0 : i32
    %c0_i32_0 = arith.constant 0 : i32
    return %arg0, %arg1, %c0_i32 : i32, i32, i32
  }
  func.func @transform_2(%arg0: i32, %arg1: i32) -> (i32, i32, i32) {
    %c0_i32 = arith.constant 0 : i32
    %c0_i32_0 = arith.constant 0 : i32
    %c0_i32_1 = arith.constant 0 : i32
    return %arg0, %c0_i32, %c0_i32_0 : i32, i32, i32
  }
}

</mosaic_0001>

<llo_original>
// kernel: tpu_custom_call.1
$region0: #{tpu_custom_call.1}
  #allocation0 [shape = 'u32[]', space=smem, size = 0x4, offset = 0x4, fixed_abs, tag = 'smem constant byte address 0x4 - core index']
  #allocation1 [shape = 'u32[144,128]{1,0:T(1,128)}', space=vmem, size = 0x12000, scoped, tag = 'internal scratch']
  #allocation2 [shape = 'f32[8,128]{1,0:T(8,128)}', space=vmem, size = 0x1000, scoped, tag = 'scratch operand']
  #allocation3 [shape = 'f32[8,128]{1,0:T(8,128)}', space=vmem, size = 0x1000, scoped, tag = 'scratch operand']
  #allocation4 [shape = 'f32[8,128]{1,0:T(8,128)}', space=vmem, size = 0x1000, scoped, tag = 'scratch operand']
  #allocation5 [shape = 'f32[8,128]{1,0:T(8,128)}', space=vmem, size = 0x1000, scoped, tag = 'scratch operand']
  %s0 = inlined_call_operand.hbm [shape: f32[2,8,128], index: 0, kind: input, shape index: {}]
  %s1 = inlined_call_operand.hbm [shape: f32[2,8,128], index: 1, kind: input, shape index: {}]
  %s2 = inlined_call_operand.hbm [shape: f32[2,4,128], index: 2, kind: output, shape index: {}]
  %s3 = sld [smem:[#allocation0]]
  $region57: #{tpu_custom_call.1} parent=0
    _
  %s5 = ssub.s32 1, %s3
  %s6 = scalar_select 0, %s5, %s3
  $region1: #{tpu_custom_call.1} parent=0
    #allocation6 [shape = 'u8[8192]{0}', space=vmem, size = 0x2000, scoped, tag = 'input window, operand 0']
    #allocation7 [shape = 's32[2]{0}', space=sflag, size = 0x8, scoped, tag = 'scoped memory for tpu_custom_call.1']
    #allocation8 [shape = 's32[2]{0}', space=sflag, size = 0x8, scoped, tag = 'scoped memory for tpu_custom_call.1']
    #allocation9 [shape = 'u8[8192]{0}', space=vmem, size = 0x2000, scoped, tag = 'input window, operand 1']
    #allocation10 [shape = 's32[2]{0}', space=sflag, size = 0x8, scoped, tag = 'scoped memory for tpu_custom_call.1']
    #allocation11 [shape = 'u8[4096]{0}', space=vmem, size = 0x1000, scoped, tag = 'output window, operand 0']
    %7 = vsyncpa [#allocation7], 0
    %s8 = scalar_lea.sflag [#allocation7], 1
    %9 = vsyncpa %s8, 0
    %10 = vsyncpa [#allocation10], 0
    %s11 = scalar_lea.sflag [#allocation10], 1
    %12 = vsyncpa %s11, 0
    %13 = vsyncpa [#allocation8], 0
    %s14 = scalar_lea.sflag [#allocation8], 1
    %15 = vsyncpa %s14, 0
    loop: start=0, step=1, limit=4
    $region2: #{tpu_custom_call.1} parent=1 // loop_pre_header
      _
    $region3: #{tpu_custom_call.1} parent=1 // loop_header
      %s17 = sphi 0, %s21
      %p18 = scmp.ge.s32.totalorder %s17, 4
      %s24 = sphi 0, %s36
      %s25 = sphi 0, %s32
      %s26 = sphi 0, %s24
      %s27 = sphi 0, %s25
      %s28 = sphi 0, %s26
      %s29 = sphi 0, %s27
      %s41 = sphi 0, %s43
      %s44 = sphi 0, %s41
      %s45 = sphi 0, %s44
      %s61 = sphi 0, %s45
      %s69 = sphi 0, %s71
      %s72 = sphi 0, %s69
      %s73 = sphi 0, %s72
      %s89 = sphi 0, %s73
      %s95 = sphi 0, %s97
      %s98 = sphi 0, %s95
      %s99 = sphi 0, %s98
      %s115 = sphi 0, %s99
    $region4: #{tpu_custom_call.1} parent=1 // loop_header_branch
      %20 = sbr.rel (%p18) target = $region8
    $region5: #{tpu_custom_call.1} parent=1 // loop_body
      %s22 = ssub.s32 %s17, 1
      %s23 = ssub.s32 %s17, 2
      %s30 = sadd.s32 1, %s25
      %p31 = scmp.ge.s32.totalorder %s30, 1
      %s32 = scalar_select %p31, 0, %s30
      %s33 = sadd.s32 1, %s24
      %s34 = scalar_select %p31, %s33, %s24
      %p35 = scmp.ge.s32.totalorder %s34, 2
      %s36 = scalar_select %p35, 0, %s34
      %s37 = ssub.s32 %s24, %s36
      %s38 = ssub.s32 %s25, %s32
      %s39 = sor.u32 %s37, %s38
      %p40 = scmp.eq.s32.totalorder %s39, 0
      %s42 = sadd.s32 %s41, 1
      %s43 = scalar_select %p40, %s41, %s42
      %p46 = pneg %p40
      %p47 = scmp.eq.s32.totalorder %s17, 1
      %p48 = por %p46, %p47
      %p49 = scmp.ne.s32.totalorder %s41, %s44
      %p50 = scmp.eq.s32.totalorder %s17, 0
      %p51 = por %p49, %p50
      %p52 = scmp.ne.s32.totalorder %s41, %s44
      %p53 = scmp.eq.s32.totalorder %s22, 1
      %p54 = por %p52, %p53
      %p55 = scmp.ne.s32.totalorder %s44, %s45
      %p56 = scmp.eq.s32.totalorder %s22, 0
      %p57 = por %p55, %p56
      %p58 = scmp.ne.s32.totalorder %s44, %s45
      %p59 = scmp.eq.s32.totalorder %s23, 1
      %p60 = por %p58, %p59
      %p62 = scmp.ne.s32.totalorder %s45, %s61
      %p63 = scmp.eq.s32.totalorder %s23, 0
      %p64 = por %p62, %p63
      %s65 = ssub.s32 %s24, %s36
      %s66 = ssub.s32 %s25, %s32
      %s67 = sor.u32 %s65, %s66
      %p68 = scmp.eq.s32.totalorder %s67, 0
      %s70 = sadd.s32 %s69, 1
      %s71 = scalar_select %p68, %s69, %s70
      %p74 = pneg %p68
      %p75 = scmp.eq.s32.totalorder %s17, 1
      %p76 = por %p74, %p75
      %p77 = scmp.ne.s32.totalorder %s69, %s72
      %p78 = scmp.eq.s32.totalorder %s17, 0
      %p79 = por %p77, %p78
      %p80 = scmp.ne.s32.totalorder %s69, %s72
      %p81 = scmp.eq.s32.totalorder %s22, 1
      %p82 = por %p80, %p81
      %p83 = scmp.ne.s32.totalorder %s72, %s73
      %p84 = scmp.eq.s32.totalorder %s22, 0
      %p85 = por %p83, %p84
      %p86 = scmp.ne.s32.totalorder %s72, %s73
      %p87 = scmp.eq.s32.totalorder %s23, 1
      %p88 = por %p86, %p87
      %p90 = scmp.ne.s32.totalorder %s73, %s89
      %p91 = scmp.eq.s32.totalorder %s23, 0
      %p92 = por %p90, %p91
      %s93 = ssub.s32 %s24, %s36
      %p94 = scmp.eq.s32.totalorder %s93, 0
      %s96 = sadd.s32 %s95, 1
      %s97 = scalar_select %p94, %s95, %s96
      %p100 = pneg %p94
      %p101 = scmp.eq.s32.totalorder %s17, 1
      %p102 = por %p100, %p101
      %p103 = scmp.ne.s32.totalorder %s95, %s98
      %p104 = scmp.eq.s32.totalorder %s17, 0
      %p105 = por %p103, %p104
      %p106 = scmp.ne.s32.totalorder %s95, %s98
      %p107 = scmp.eq.s32.totalorder %s22, 1
      %p108 = por %p106, %p107
      %p109 = scmp.ne.s32.totalorder %s98, %s99
      %p110 = scmp.eq.s32.totalorder %s22, 0
      %p111 = por %p109, %p110
      %p112 = scmp.ne.s32.totalorder %s98, %s99
      %p113 = scmp.eq.s32.totalorder %s23, 1
      %p114 = por %p112, %p113
      %p116 = scmp.ne.s32.totalorder %s99, %s115
      %p117 = scmp.eq.s32.totalorder %s23, 0
      %p118 = por %p116, %p117
      %p119 = scmp.le.s32.totalorder 1, %s17
      %p120 = scmp.lt.s32.totalorder %s17, 3
      %p121 = pnand %p119, %p120
      %p122 = pneg %p121
      // Predicated region
      $region9: #{tpu_custom_call.1} parent=5 // pred_check
        _
      $region10: #{tpu_custom_call.1} parent=5 // pred_check_branch
        %124 = sbr.rel (%p121) target = $region12
      $region11: #{tpu_custom_call.1} parent=5 // pred_region
        %s125 = ssub.s32 %s17, 1
      $region12: #{tpu_custom_call.1} parent=5 // pred_fallthru
        _
      %p126 = scmp.lt.s32.totalorder %s17, 2
      // Predicated region
      $region13: #{tpu_custom_call.1} parent=5 // pred_check
        %p127 = pneg %p126
      $region14: #{tpu_custom_call.1} parent=5 // pred_check_branch
        %129 = sbr.rel (%p127) target = $region16
      $region15: #{tpu_custom_call.1} parent=5 // pred_region
        // Predicated region
        $region17: #{tpu_custom_call.1} parent=15 // pred_check
          %p130 = pneg %p51
        $region18: #{tpu_custom_call.1} parent=15 // pred_check_branch
          %132 = sbr.rel (%p130) target = $region20
        $region19: #{tpu_custom_call.1} parent=15 // pred_region
          %s133 = sand.u32 %s41, 1
          %s134 = scalar_lea.sflag [#allocation7], %s133
          %s135 = sand.u32 %s41, 1
          %s136 = smul.addr %s135, 8
          %s137 = scalar_lea.vmem [#allocation6], %s136
          %s139 = ssub.s32 128, 128
          %140 = vsyncadd %s134, %s139
          %s141 = sadd.s32 %s25, %s24
          %s142 = smul.addr %s141, 128
          %s143 = scalar_lea.hbm %s0, %s142
          %s145 = sshll.u32 %s137, 4
          %s146 = int_to_ptr.vmem [resolvable:$true] %s145
          %148 = dma.hbm_to_vmem [thread:$0]  %s143, 128, %s146, %s134
        $region20: #{tpu_custom_call.1} parent=15 // pred_fallthru
          _
        // Predicated region
        $region21: #{tpu_custom_call.1} parent=15 // pred_check
          %p149 = pneg %p79
        $region22: #{tpu_custom_call.1} parent=15 // pred_check_branch
          %151 = sbr.rel (%p149) target = $region24
        $region23: #{tpu_custom_call.1} parent=15 // pred_region
          %s152 = sand.u32 %s69, 1
          %s153 = scalar_lea.sflag [#allocation10], %s152
          %s154 = sand.u32 %s69, 1
          %s155 = smul.addr %s154, 8
          %s156 = scalar_lea.vmem [#allocation9], %s155
          %s158 = ssub.s32 128, 128
          %159 = vsyncadd %s153, %s158
          %s160 = sadd.s32 %s25, %s24
          %s161 = smul.addr %s160, 128
          %s162 = scalar_lea.hbm %s1, %s161
          %s164 = sshll.u32 %s156, 4
          %s165 = int_to_ptr.vmem [resolvable:$true] %s164
          %167 = dma.hbm_to_vmem [thread:$0]  %s162, 128, %s165, %s153
        $region24: #{tpu_custom_call.1} parent=15 // pred_fallthru
          _
      $region16: #{tpu_custom_call.1} parent=5 // pred_fallthru
        _
      %p168 = scmp.le.s32.totalorder 1, %s17
      %p169 = scmp.lt.s32.totalorder %s17, 3
      %p170 = pnand %p168, %p169
      %p171 = pneg %p170
      // Predicated region
      $region25: #{tpu_custom_call.1} parent=5 // pred_check
        _
      $region26: #{tpu_custom_call.1} parent=5 // pred_check_branch
        %173 = sbr.rel (%p170) target = $region28
      $region27: #{tpu_custom_call.1} parent=5 // pred_region
        %s174 = ssub.s32 %s17, 1
        %s175 = sand.u32 %s44, 1
        %s176 = scalar_lea.sflag [#allocation7], %s175
        %s177 = sand.u32 %s44, 1
        %s178 = smul.addr %s177, 8
        %s179 = scalar_lea.vmem [#allocation6], %s178
        // Predicated region
        $region29: #{tpu_custom_call.1} parent=27 // pred_check
          %p180 = pneg %p57
        $region30: #{tpu_custom_call.1} parent=27 // pred_check_branch
          %182 = sbr.rel (%p180) target = $region32
        $region31: #{tpu_custom_call.1} parent=27 // pred_region
          %183 = dma.done %s176, 128
        $region32: #{tpu_custom_call.1} parent=27 // pred_fallthru
          _
        %s184 = sand.u32 %s72, 1
        %s185 = scalar_lea.sflag [#allocation10], %s184
        %s186 = sand.u32 %s72, 1
        %s187 = smul.addr %s186, 8
        %s188 = scalar_lea.vmem [#allocation9], %s187
        // Predicated region
        $region33: #{tpu_custom_call.1} parent=27 // pred_check
          %p189 = pneg %p85
        $region34: #{tpu_custom_call.1} parent=27 // pred_check_branch
          %191 = sbr.rel (%p189) target = $region36
        $region35: #{tpu_custom_call.1} parent=27 // pred_region
          %192 = dma.done %s185, 128
        $region36: #{tpu_custom_call.1} parent=27 // pred_fallthru
          _
        %s193 = sand.u32 %s44, 1
        %s194 = scalar_lea.sflag [#allocation7], %s193
        %s195 = sand.u32 %s44, 1
        %s196 = smul.addr %s195, 8
        %s197 = scalar_lea.vmem [#allocation6], %s196
        %p198 = pneg %p57
        %p199 = pneg %p54
        %s200 = sand.u32 %s72, 1
        %s201 = scalar_lea.sflag [#allocation10], %s200
        %s202 = sand.u32 %s72, 1
        %s203 = smul.addr %s202, 8
        %s204 = scalar_lea.vmem [#allocation9], %s203
        %p205 = pneg %p85
        %p206 = pneg %p82
        %p207 = pneg %p111
        %p208 = pneg %p108
        %s209 = sand.u32 %s98, 1
        %s210 = scalar_lea.sflag [#allocation8], %s209
        %s211 = sand.u32 %s98, 1
        %s212 = smul.addr %s211, 4
        %s213 = scalar_lea.vmem [#allocation11], %s212
        %p214 = scmp.eq.s32.totalorder %s27, 0
        // Predicated region
        $region37: #{tpu_custom_call.1} parent=27 // pred_check
          %p215 = pneg %p214
        $region38: #{tpu_custom_call.1} parent=27 // pred_check_branch
          %217 = sbr.rel (%p215) target = $region40
        $region39: #{tpu_custom_call.1} parent=27 // pred_region
          %218 = vst [vmem:[#allocation2] sm:$0xff] 0.0
          %219 = vst [vmem:[#allocation3] sm:$0xff] 0.0
          %220 = vst [vmem:[#allocation4] sm:$0xff] 0.0
          %221 = vst [vmem:[#allocation5] sm:$0xff] 0.0
        $region40: #{tpu_custom_call.1} parent=27 // pred_fallthru
          _
        %v222 = vld [vmem:[%s179] sm:$0xff]
        %v223 = vld [vmem:[%s188] sm:$0xff]
        %v224 = vlog2.pop %v222
        %v225 = vmul.f32 %v224, 0.6931472
        %v226 = vmax.f32 %v225, -100.0
        %v227 = vsub.f32 1.0, %v222
        %v228 = vlog2.pop %v227
        %v229 = vmul.f32 %v228, 0.6931472
        %v230 = vmax.f32 %v229, -100.0
        %v231 = vmul.f32 %v223, %v226
        %v232 = vsub.f32 1.0, %v223
        %v233 = vmul.f32 %v232, %v230
        %v234 = vadd.f32 %v231, %v233
        %v235 = vsub.f32 0.0, %v234
        %v236 = vld [vmem:[#allocation2] sm:$0xff]
        %v237 = vmul.f32 %v222, %v223
        %v238 = vadd.f32 %v236, %v237
        %239 = vst [vmem:[#allocation2] sm:$0xff] %v238
        %v240 = vld [vmem:[#allocation3] sm:$0xff]
        %v241 = vadd.f32 %v240, %v222
        %242 = vst [vmem:[#allocation3] sm:$0xff] %v241
        %v243 = vld [vmem:[#allocation4] sm:$0xff]
        %v244 = vadd.f32 %v243, %v223
        %245 = vst [vmem:[#allocation4] sm:$0xff] %v244
        %v246 = vld [vmem:[#allocation5] sm:$0xff]
        %v247 = vadd.f32 %v246, %v235
        %248 = vst [vmem:[#allocation5] sm:$0xff] %v247
        // Predicated region
        $region41: #{tpu_custom_call.1} parent=27 // pred_check
          %p249 = pneg %p214
        $region42: #{tpu_custom_call.1} parent=27 // pred_check_branch
          %251 = sbr.rel (%p249) target = $region44
        $region43: #{tpu_custom_call.1} parent=27 // pred_region
          %v252 = vld [vmem:[#allocation2] sm:$0xff]
          %253 = vadd.xlane.f32.xlu0 %v252
          %v254 = vpop.xlane.xlu0 %253
          %v255 = vrot.slane %v254, 4
          %v256 = vadd.f32 %v254, %v255
          %v257 = vrot.slane %v256, 2
          %v258 = vadd.f32 %v256, %v257
          %v259 = vrot.slane %v258, 1
          %v260 = vadd.f32 %v258, %v259
          %s261 = vtos %v260
          %v262 = vld [vmem:[#allocation3] sm:$0xff]
          %263 = vadd.xlane.f32.xlu0 %v262
          %v264 = vpop.xlane.xlu0 %263
          %v265 = vrot.slane %v264, 4
          %v266 = vadd.f32 %v264, %v265
          %v267 = vrot.slane %v266, 2
          %v268 = vadd.f32 %v266, %v267
          %v269 = vrot.slane %v268, 1
          %v270 = vadd.f32 %v268, %v269
          %s271 = vtos %v270
          %v272 = vld [vmem:[#allocation4] sm:$0xff]
          %273 = vadd.xlane.f32.xlu0 %v272
          %v274 = vpop.xlane.xlu0 %273
          %v275 = vrot.slane %v274, 4
          %v276 = vadd.f32 %v274, %v275
          %v277 = vrot.slane %v276, 2
          %v278 = vadd.f32 %v276, %v277
          %v279 = vrot.slane %v278, 1
          %v280 = vadd.f32 %v278, %v279
          %s281 = vtos %v280
          %v282 = vld [vmem:[#allocation5] sm:$0xff]
          %283 = vadd.xlane.f32.xlu0 %v282
          %v284 = vpop.xlane.xlu0 %283
          %v285 = vrot.slane %v284, 4
          %v286 = vadd.f32 %v284, %v285
          %v287 = vrot.slane %v286, 2
          %v288 = vadd.f32 %v286, %v287
          %v289 = vrot.slane %v288, 1
          %v290 = vadd.f32 %v288, %v289
          %s291 = vtos %v290
          %v292 = vstv %s261
          %v293 = vstv %s271
          %v294 = vstv %s281
          %v295 = vstv %s291
          %vm296 = vcmask 1040384
          %v297 = vsel %vm296, %v292, %v293
          %vm298 = vcmask 1041408
          %v299 = vsel %vm298, %v297, %v294
          %vm300 = vcmask 1042432
          %v301 = vsel %vm300, %v299, %v295
          %302 = vst [vmem:[%s213] sm:$0xf] %v301
        $region44: #{tpu_custom_call.1} parent=27 // pred_fallthru
          _
        %s303 = sand.u32 %s98, 1
        %s304 = scalar_lea.sflag [#allocation8], %s303
        %s305 = sand.u32 %s98, 1
        %s306 = smul.addr %s305, 4
        %s307 = scalar_lea.vmem [#allocation11], %s306
        // Predicated region
        $region45: #{tpu_custom_call.1} parent=27 // pred_check
          %p308 = pneg %p108
        $region46: #{tpu_custom_call.1} parent=27 // pred_check_branch
          %310 = sbr.rel (%p308) target = $region48
        $region47: #{tpu_custom_call.1} parent=27 // pred_region
          %s312 = ssub.s32 64, 64
          %313 = vsyncadd %s304, %s312
          %s314 = smul.addr %s26, 64
          %s315 = scalar_lea.hbm %s2, %s314
          %s317 = sshll.u32 %s307, 4
          %s318 = int_to_ptr.vmem [resolvable:$true] %s317
          %320 = dma.vmem_to_hbm [thread:$0]  %s318, 64, %s315, %s304
        $region48: #{tpu_custom_call.1} parent=27 // pred_fallthru
          _
      $region28: #{tpu_custom_call.1} parent=5 // pred_fallthru
        _
      %p321 = scmp.le.s32.totalorder 2, %s17
      // Predicated region
      $region49: #{tpu_custom_call.1} parent=5 // pred_check
        %p322 = pneg %p321
      $region50: #{tpu_custom_call.1} parent=5 // pred_check_branch
        %324 = sbr.rel (%p322) target = $region52
      $region51: #{tpu_custom_call.1} parent=5 // pred_region
        %s325 = ssub.s32 %s17, 2
        // Predicated region
        $region53: #{tpu_custom_call.1} parent=51 // pred_check
          %p326 = pneg %p114
        $region54: #{tpu_custom_call.1} parent=51 // pred_check_branch
          %328 = sbr.rel (%p326) target = $region56
        $region55: #{tpu_custom_call.1} parent=51 // pred_region
          %s329 = sand.u32 %s99, 1
          %s330 = scalar_lea.sflag [#allocation8], %s329
          %s331 = sand.u32 %s99, 1
          %s332 = smul.addr %s331, 4
          %s333 = scalar_lea.vmem [#allocation11], %s332
          %334 = dma.done %s330, 64
        $region56: #{tpu_custom_call.1} parent=51 // pred_fallthru
          _
      $region52: #{tpu_custom_call.1} parent=5 // pred_fallthru
        _
    $region6: #{tpu_custom_call.1} parent=1 // loop_footer
      %s21 = sadd.s32 1, %s17
    $region7: #{tpu_custom_call.1} parent=1 // loop_footer_branch
      %16 = sbr.rel target = $region3
    $region8: #{tpu_custom_call.1} parent=1 // loop_exit
      _
    %335 = vsyncpa [#allocation7], 1
    %s336 = scalar_lea.sflag [#allocation7], 1
    %337 = vsyncpa %s336, 1
    %338 = vsyncpa [#allocation10], 1
    %s339 = scalar_lea.sflag [#allocation10], 1
    %340 = vsyncpa %s339, 1
    %341 = vsyncpa [#allocation8], 1
    %s342 = scalar_lea.sflag [#allocation8], 1
    %343 = vsyncpa %s342, 1

</llo_original>
